<compile_context>
chip_gen: v7x
topology: tpu7x:2x2x1
jax: 0.10.0
libtpu: 0.0.40
codegen_flags: <defaults>
</compile_context>

<pallas_src>
import jax
import jax.numpy as jnp
from jax import lax
from jax.experimental import pallas as pl
from jax.experimental.pallas import tpu as pltpu

_CHUNK = 512  # inner lane-chunk: (128, 512) f32 hidden tile = 64 vregs


def _premodel_kernel(x_ref, w1_ref, b1_ref, w2_ref, b2_ref, out_ref):
    tb = out_ref.shape[1]
    n_full = tb // _CHUNK
    rem = tb - n_full * _CHUNK           # static; multiple of 128

    # Hoisted loads (broadcast_in_dim is not CSE'd, so broadcasts are hoisted
    # out of the inner loop too).
    w1 = w1_ref[...]                     # (128, 4)   resident
    w2 = w2_ref[...]                     # (1, 128)   resident
    b2 = b2_ref[0, 0]                    # SMEM scalar

    def do_chunk(off, width, b1b):
        xc = x_ref[:, pl.ds(off, width)]                                # (4, width)
        # fc1 on the MXU, f32 accumulate.
        h = jnp.dot(w1, xc, preferred_element_type=jnp.float32) + b1b  # (128, width)
        # leaky_relu (PyTorch default slope 0.01): mul + max, 2 VALU ops/vreg.
        h = jnp.maximum(h, 0.01 * h)
        # fc2 on the MXU: (1,128) @ (128,width) -> (1,width).
        o = jnp.dot(w2, h, preferred_element_type=jnp.float32)
        out_ref[:, pl.ds(off, width)] = (o + b2).astype(out_ref.dtype)

    if n_full > 0:
        b1b = jnp.broadcast_to(b1_ref[...], (128, _CHUNK))
        def body(c, carry):
            do_chunk(pl.multiple_of(c * _CHUNK, _CHUNK), _CHUNK, b1b)
            return carry
        lax.fori_loop(0, n_full, body, 0, unroll=True)

    if rem > 0:  # static tail chunk (tb not a multiple of 512, e.g. small B)
        b1r = jnp.broadcast_to(b1_ref[...], (128, rem))
        do_chunk(n_full * _CHUNK, rem, b1r)


def _round_up(x, m):
    return (x + m - 1) // m * m


def premodel_forward(x, w1, b1, w2, b2, *, tb=16384):
    """Forward pass of PreModel.

    x:  (B, 4)   float32   (same layout as the PyTorch nn.Linear input)
    w1: (4, 128) float32   (transposed vs. PyTorch's (128, 4) fc1.weight)
    b1: (128,)   float32
    w2: (128,)   float32   (PyTorch fc2.weight.squeeze(0))
    b2: ()       float32
    returns (B, 1) float32
    """
    B = x.shape[0]
    # Tile big enough to amortize per-grid-step overhead, but capped so the
    # batch axis produces >= 2 grid steps when B allows (v7x megacore).
    tb_eff = max(128, min(tb, _round_up(pl.cdiv(B, 2), 128)))
    grid = pl.cdiv(B, tb_eff)

    # Lane-dense transposed activations; no pad -- the OOB tail block's garbage
    # columns only feed output columns >= B, which are dropped on writeback.
    x_t = x.T                                        # (4, B)
    w1_t = w1.T                                      # (128, 4)
    b1_c = b1.reshape(128, 1)                        # (128, 1)
    w2_r = w2.reshape(1, 128)                        # (1, 128)
    b2_s = jnp.asarray(b2, jnp.float32).reshape(1, 1)

    out_t = pl.pallas_call(
        _premodel_kernel,
        out_shape=jax.ShapeDtypeStruct((1, B), jnp.float32),
        grid_spec=pltpu.PrefetchScalarGridSpec(
            num_scalar_prefetch=0,
            grid=(grid,),
            in_specs=[
                # streamed, double-buffered activation tile
                pl.BlockSpec((4, tb_eff), lambda i: (0, i)),
                # weights / biases resident across the whole grid
                pl.BlockSpec((128, 4), lambda i: (0, 0)),
                pl.BlockSpec((128, 1), lambda i: (0, 0)),
                pl.BlockSpec((1, 128), lambda i: (0, 0)),
                # b2 as an SMEM scalar
                pl.BlockSpec(memory_space=pltpu.MemorySpace.SMEM),
            ],
            out_specs=pl.BlockSpec((1, tb_eff), lambda i: (0, i)),
        ),
        compiler_params=pltpu.CompilerParams(
            # batch tiles are independent -> megacore-shardable on v7x
            dimension_semantics=("parallel",),
        ),
    )(x_t, w1_t, b1_c, w2_r, b2_s)

    return out_t.reshape(B, 1)


def _init_params(key):
    # Deterministic synthetic init (roughly PyTorch's uniform fan-in init).
    k1, k2, k3, k4 = jax.random.split(key, 4)
    lim1 = 1.0 / jnp.sqrt(4.0)
    lim2 = 1.0 / jnp.sqrt(128.0)
    w1 = jax.random.uniform(k1, (4, 128), jnp.float32, -lim1, lim1)
    b1 = jax.random.uniform(k2, (128,), jnp.float32, -lim1, lim1)
    w2 = jax.random.uniform(k3, (128,), jnp.float32, -lim2, lim2)
    b2 = jax.random.uniform(k4, (), jnp.float32, -lim2, lim2)
    return w1, b1, w2, b2


def _reference(x, w1, b1, w2, b2):
    h = x @ w1 + b1
    h = jnp.where(h >= 0, h, 0.01 * h)
    return h @ w2.reshape(128, 1) + b2


if __name__ == "__main__":
    key = jax.random.PRNGKey(0)
    kx, kp = jax.random.split(key)
    w1, b1, w2, b2 = _init_params(kp)

    # Small case (B=8): single tile, tail-only static chunk.
    B = 8
    x = jax.random.normal(kx, (B, 4), jnp.float32)
    out = premodel_forward(x, w1, b1, w2, b2)
    jax.block_until_ready(out)
    ref = _reference(x, w1, b1, w2, b2)
    assert out.shape == (B, 1)
    assert jnp.allclose(out, ref, atol=1e-4, rtol=1e-4)

    # Multi-tile + OOB tail case (B=300 -> tb_eff=256, grid=2).
    B2 = 300
    x2 = jax.random.normal(jax.random.PRNGKey(1), (B2, 4), jnp.float32)
    out2 = premodel_forward(x2, w1, b1, w2, b2)
    jax.block_until_ready(out2)
    ref2 = _reference(x2, w1, b1, w2, b2)
    assert out2.shape == (B2, 1)
    assert jnp.allclose(out2, ref2, atol=1e-4, rtol=1e-4)

    # Multi-chunk inner loop case (B=2048 -> tb_eff=1024, grid=2, 2 chunks/tile).
    B3 = 2048
    x3 = jax.random.normal(jax.random.PRNGKey(2), (B3, 4), jnp.float32)
    out3 = premodel_forward(x3, w1, b1, w2, b2)
    jax.block_until_ready(out3)
    ref3 = _reference(x3, w1, b1, w2, b2)
    assert out3.shape == (B3, 1)
    assert jnp.allclose(out3, ref3, atol=1e-4, rtol=1e-4)

    print("KERNEL_OK")
</pallas_src>

<mosaic_0001>
module attributes {stable_mosaic.version = 11 : i64} {
  func.func @_premodel_kernel(%arg0: i32, %arg1: memref<4x128xf32, #tpu.memory_space<vmem>>, %arg2: memref<128x4xf32, #tpu.memory_space<vmem>>, %arg3: memref<128x1xf32, #tpu.memory_space<vmem>>, %arg4: memref<1x128xf32, #tpu.memory_space<vmem>>, %arg5: memref<1x1xf32, #tpu.memory_space<smem>>, %arg6: memref<1x128xf32, #tpu.memory_space<vmem>>) attributes {dimension_semantics = [#tpu.dimension_semantics<parallel>], iteration_bounds = array<i64: 1>, scalar_prefetch = 0 : i64, scratch_operands = 0 : i64, tpu.core_type = #tpu.core_type<tc>, window_params = [{transform_indices = @transform_0, window_bounds = array<i64: 4, 128>}, {pipeline_mode = #tpu.pipeline_mode<synchronous>, transform_indices = @transform_1, window_bounds = array<i64: 128, 4>}, {pipeline_mode = #tpu.pipeline_mode<synchronous>, transform_indices = @transform_2, window_bounds = array<i64: 128, 1>}, {pipeline_mode = #tpu.pipeline_mode<synchronous>, transform_indices = @transform_3, window_bounds = array<i64: 1, 128>}, {transform_indices = @transform_4, window_bounds = array<i64: 1, 1>}, {transform_indices = @transform_5, window_bounds = array<i64: 1, 128>}]} {
    %c0 = arith.constant 0 : index
    %c0_0 = arith.constant 0 : index
    %0 = vector.load %arg2[%c0, %c0_0] : memref<128x4xf32, #tpu.memory_space<vmem>>, vector<128x4xf32>
    %c0_1 = arith.constant 0 : index
    %c0_2 = arith.constant 0 : index
    %1 = vector.load %arg4[%c0_1, %c0_2] : memref<1x128xf32, #tpu.memory_space<vmem>>, vector<1x128xf32>
    %c0_3 = arith.constant 0 : index
    %c0_4 = arith.constant 0 : index
    %2 = memref.load %arg5[%c0_3, %c0_4] : memref<1x1xf32, #tpu.memory_space<smem>>
    %c0_5 = arith.constant 0 : index
    %c0_6 = arith.constant 0 : index
    %3 = vector.load %arg3[%c0_5, %c0_6] : memref<128x1xf32, #tpu.memory_space<vmem>>, vector<128x1xf32>
    %4 = vector.shape_cast %3 : vector<128x1xf32> to vector<128x1xf32>
    %5 = vector.broadcast %4 : vector<128x1xf32> to vector<128x128xf32>
    %c0_7 = arith.constant 0 : index
    %c0_8 = arith.constant 0 : index
    %6 = vector.load %arg1[%c0_7, %c0_8] : memref<4x128xf32, #tpu.memory_space<vmem>>, vector<4x128xf32>
    %cst = arith.constant dense<0.000000e+00> : vector<128x128xf32>
    %7 = tpu.matmul %0, %6, %cst {dimension_numbers = #tpu.dot_dimension_numbers<[1], [0], [0], [1], [0, 0, 1, 1], [], []>} : vector<128x4xf32>, vector<4x128xf32>, vector<128x128xf32> -> vector<128x128xf32>
    %8 = arith.addf %7, %5 : vector<128x128xf32>
    %cst_9 = arith.constant 0.00999999977 : f32
    %9 = vector.broadcast %cst_9 : f32 to vector<128x128xf32>
    %10 = arith.mulf %9, %8 : vector<128x128xf32>
    %11 = arith.maximumf %8, %10 : vector<128x128xf32>
    %cst_10 = arith.constant dense<0.000000e+00> : vector<1x128xf32>
    %12 = tpu.matmul %1, %11, %cst_10 {dimension_numbers = #tpu.dot_dimension_numbers<[1], [0], [0], [1], [0, 0, 1, 1], [], []>} : vector<1x128xf32>, vector<128x128xf32>, vector<1x128xf32> -> vector<1x128xf32>
    %13 = vector.broadcast %2 : f32 to vector<1x128xf32>
    %14 = arith.addf %12, %13 : vector<1x128xf32>
    %c0_11 = arith.constant 0 : index
    %c0_12 = arith.constant 0 : index
    %15 = vector.load %arg6[%c0_11, %c0_12] : memref<1x128xf32, #tpu.memory_space<vmem>>, vector<1x128xf32>
    tpu.vector_store %arg6[%c0_11, %c0_12], %14 {strides = array<i32>} : memref<1x128xf32, #tpu.memory_space<vmem>>, vector<1x128xf32>,
    return
  }
  func.func @transform_0(%arg0: i32) -> (i32, i32) {
    %c0_i32 = arith.constant 0 : i32
    %c0_i32_0 = arith.constant 0 : i32
    return %c0_i32, %arg0 : i32, i32
  }
  func.func @transform_1(%arg0: i32) -> (i32, i32) {
    %c0_i32 = arith.constant 0 : i32
    %c0_i32_0 = arith.constant 0 : i32
    %c0_i32_1 = arith.constant 0 : i32
    return %c0_i32, %c0_i32_0 : i32, i32
  }
  func.func @transform_2(%arg0: i32) -> (i32, i32) {
    %c0_i32 = arith.constant 0 : i32
    %c0_i32_0 = arith.constant 0 : i32
    %c0_i32_1 = arith.constant 0 : i32
    return %c0_i32, %c0_i32_0 : i32, i32
  }
  func.func @transform_3(%arg0: i32) -> (i32, i32) {
    %c0_i32 = arith.constant 0 : i32
    %c0_i32_0 = arith.constant 0 : i32
    %c0_i32_1 = arith.constant 0 : i32
    return %c0_i32, %c0_i32_0 : i32, i32
  }
  func.func @transform_4(%arg0: i32) -> (i32, i32) {
    %c0_i32 = arith.constant 0 : i32
    %c0_i32_0 = arith.constant 0 : i32
    %c0_i32_1 = arith.constant 0 : i32
    return %c0_i32, %c0_i32_0 : i32, i32
  }
  func.func @transform_5(%arg0: i32) -> (i32, i32) {
    %c0_i32 = arith.constant 0 : i32
    %c0_i32_0 = arith.constant 0 : i32
    return %c0_i32, %arg0 : i32, i32
  }
}

</mosaic_0001>

<llo_original>
// kernel: tpu_custom_call.1
$region0: #{tpu_custom_call.1}
  #allocation0 [shape = 'u32[]', space=smem, size = 0x4, offset = 0x4, fixed_abs, tag = 'smem constant byte address 0x4 - core index']
  #allocation1 [shape = 'u32[144,128]{1,0:T(1,128)}', space=vmem, size = 0x12000, scoped, tag = 'internal scratch']
  #allocation2 [shape = 'f32[1,1]{1,0:T(1,128)S(6)}', space=smem, size = 0x200, scoped, tag = 'scoped memory for tpu_custom_call.1']
  %s0 = inlined_call_operand.vmem [shape: f32[4,8], index: 0, kind: input, shape index: {}]
  %s1 = inlined_call_operand.vmem [shape: f32[128,4], index: 1, kind: input, shape index: {}]
  %s2 = inlined_call_operand.vmem [shape: f32[128,1], index: 2, kind: input, shape index: {}]
  %s3 = inlined_call_operand.vmem [shape: f32[1,128], index: 3, kind: input, shape index: {}]
  %s4 = inlined_call_operand.<no memory space> [shape: f32[1,1], index: 4, kind: input, shape index: {}]
  %s5 = inlined_call_operand.hbm [shape: f32[1,8], index: 5, kind: output, shape index: {}]
  %s6 = sld [smem:[#allocation0]]
  $region30: #{tpu_custom_call.1} parent=0
    _
  %s8 = ssub.s32 1, %s6
  %s9 = scalar_select 0, %s8, %s6
  %10 = sst [smem:[#allocation2]] %s4
  $region1: #{tpu_custom_call.1} parent=0
    #allocation3 [shape = 'u8[512]{0}', space=vmem, size = 0x400, scoped, tag = 'output window, operand 0, single buffered']
    #allocation4 [shape = 's32[1]{0}', space=sflag, size = 0x4, scoped, tag = 'scoped memory for tpu_custom_call.1']
    %11 = vsyncpa [#allocation4], 0
    // Predicated region
    $region2: #{tpu_custom_call.1} parent=1 // pred_check
      _
    $region3: #{tpu_custom_call.1} parent=1 // pred_check_branch
      %13 = sbr.rel (0) target = $region5
    $region4: #{tpu_custom_call.1} parent=1 // pred_region
      _
    $region5: #{tpu_custom_call.1} parent=1 // pred_fallthru
      _
    // Predicated region
    $region6: #{tpu_custom_call.1} parent=1 // pred_check
      _
    $region7: #{tpu_custom_call.1} parent=1 // pred_check_branch
      %15 = sbr.rel (0) target = $region9
    $region8: #{tpu_custom_call.1} parent=1 // pred_region
      _
    $region9: #{tpu_custom_call.1} parent=1 // pred_fallthru
      _
    // Predicated region
    $region10: #{tpu_custom_call.1} parent=1 // pred_check
      _
    $region11: #{tpu_custom_call.1} parent=1 // pred_check_branch
      %17 = sbr.rel (0) target = $region13
    $region12: #{tpu_custom_call.1} parent=1 // pred_region
      _
    $region13: #{tpu_custom_call.1} parent=1 // pred_fallthru
      _
    // Predicated region
    $region14: #{tpu_custom_call.1} parent=1 // pred_check
      _
    $region15: #{tpu_custom_call.1} parent=1 // pred_check_branch
      %19 = sbr.rel (0) target = $region17
    $region16: #{tpu_custom_call.1} parent=1 // pred_region
      _
    $region17: #{tpu_custom_call.1} parent=1 // pred_fallthru
      _
    // Predicated region
    $region18: #{tpu_custom_call.1} parent=1 // pred_check
      _
    $region19: #{tpu_custom_call.1} parent=1 // pred_check_branch
      %21 = sbr.rel (0) target = $region21
    $region20: #{tpu_custom_call.1} parent=1 // pred_region
      _
    $region21: #{tpu_custom_call.1} parent=1 // pred_fallthru
      _
    %v22 = vld [vmem:[%s1] sm:$0xff]
    %v23 = vld [vmem:[%s1 + $0x8] sm:$0xff]
    %v24 = vld [vmem:[%s1 + $0x10] sm:$0xff]
    %v25 = vld [vmem:[%s1 + $0x18] sm:$0xff]
    %v26 = vld [vmem:[%s1 + $0x20] sm:$0xff]
    %v27 = vld [vmem:[%s1 + $0x28] sm:$0xff]
    %v28 = vld [vmem:[%s1 + $0x30] sm:$0xff]
    %v29 = vld [vmem:[%s1 + $0x38] sm:$0xff]
    %v30 = vld [vmem:[%s1 + $0x40] sm:$0xff]
    %v31 = vld [vmem:[%s1 + $0x48] sm:$0xff]
    %v32 = vld [vmem:[%s1 + $0x50] sm:$0xff]
    %v33 = vld [vmem:[%s1 + $0x58] sm:$0xff]
    %v34 = vld [vmem:[%s1 + $0x60] sm:$0xff]
    %v35 = vld [vmem:[%s1 + $0x68] sm:$0xff]
    %v36 = vld [vmem:[%s1 + $0x70] sm:$0xff]
    %v37 = vld [vmem:[%s1 + $0x78] sm:$0xff]
    %v38 = vld [vmem:[%s3] sm:$0x1]
    %s39 = sld [smem:[#allocation2]]
    %v40 = vld [vmem:[%s2] sm:$0xff]
    %v41 = vld [vmem:[%s2 + $0x8] sm:$0xff]
    %v42 = vld [vmem:[%s2 + $0x10] sm:$0xff]
    %v43 = vld [vmem:[%s2 + $0x18] sm:$0xff]
    %v44 = vld [vmem:[%s2 + $0x20] sm:$0xff]
    %v45 = vld [vmem:[%s2 + $0x28] sm:$0xff]
    %v46 = vld [vmem:[%s2 + $0x30] sm:$0xff]
    %v47 = vld [vmem:[%s2 + $0x38] sm:$0xff]
    %v48 = vld [vmem:[%s2 + $0x40] sm:$0xff]
    %v49 = vld [vmem:[%s2 + $0x48] sm:$0xff]
    %v50 = vld [vmem:[%s2 + $0x50] sm:$0xff]
    %v51 = vld [vmem:[%s2 + $0x58] sm:$0xff]
    %v52 = vld [vmem:[%s2 + $0x60] sm:$0xff]
    %v53 = vld [vmem:[%s2 + $0x68] sm:$0xff]
    %v54 = vld [vmem:[%s2 + $0x70] sm:$0xff]
    %v55 = vld [vmem:[%s2 + $0x78] sm:$0xff]
    %57 = vset.pattern.permute.xlu0 0
    %58 = vperm.xlu0 %57, %v40
    %v59 = vpop.permute.xlu0 %58
    %62 = vset.pattern.permute.xlu0 0
    %63 = vperm.xlu0 %62, %v41
    %v64 = vpop.permute.xlu0 %63
    %67 = vset.pattern.permute.xlu0 0
    %68 = vperm.xlu0 %67, %v42
    %v69 = vpop.permute.xlu0 %68
    %72 = vset.pattern.permute.xlu0 0
    %73 = vperm.xlu0 %72, %v43
    %v74 = vpop.permute.xlu0 %73
    %77 = vset.pattern.permute.xlu0 0
    %78 = vperm.xlu0 %77, %v44
    %v79 = vpop.permute.xlu0 %78
    %82 = vset.pattern.permute.xlu0 0
    %83 = vperm.xlu0 %82, %v45
    %v84 = vpop.permute.xlu0 %83
    %87 = vset.pattern.permute.xlu0 0
    %88 = vperm.xlu0 %87, %v46
    %v89 = vpop.permute.xlu0 %88
    %92 = vset.pattern.permute.xlu0 0
    %93 = vperm.xlu0 %92, %v47
    %v94 = vpop.permute.xlu0 %93
    %97 = vset.pattern.permute.xlu0 0
    %98 = vperm.xlu0 %97, %v48
    %v99 = vpop.permute.xlu0 %98
    %102 = vset.pattern.permute.xlu0 0
    %103 = vperm.xlu0 %102, %v49
    %v104 = vpop.permute.xlu0 %103
    %107 = vset.pattern.permute.xlu0 0
    %108 = vperm.xlu0 %107, %v50
    %v109 = vpop.permute.xlu0 %108
    %112 = vset.pattern.permute.xlu0 0
    %113 = vperm.xlu0 %112, %v51
    %v114 = vpop.permute.xlu0 %113
    %117 = vset.pattern.permute.xlu0 0
    %118 = vperm.xlu0 %117, %v52
    %v119 = vpop.permute.xlu0 %118
    %122 = vset.pattern.permute.xlu0 0
    %123 = vperm.xlu0 %122, %v53
    %v124 = vpop.permute.xlu0 %123
    %127 = vset.pattern.permute.xlu0 0
    %128 = vperm.xlu0 %127, %v54
    %v129 = vpop.permute.xlu0 %128
    %132 = vset.pattern.permute.xlu0 0
    %133 = vperm.xlu0 %132, %v55
    %v134 = vpop.permute.xlu0 %133
    %v136 = vld [vmem:[%s0] sm:$0xf]
    %vm137 = vcmask 31744
    %v139 = vsel %vm137, %v22, 0
    %v142 = vsel %vm137, %v23, 0
    %v145 = vsel %vm137, %v24, 0
    %v148 = vsel %vm137, %v25, 0
    %v151 = vsel %vm137, %v26, 0
    %v154 = vsel %vm137, %v27, 0
    %v157 = vsel %vm137, %v28, 0
    %v160 = vsel %vm137, %v29, 0
    %v163 = vsel %vm137, %v30, 0
    %v166 = vsel %vm137, %v31, 0
    %v169 = vsel %vm137, %v32, 0
    %v172 = vsel %vm137, %v33, 0
    %v175 = vsel %vm137, %v34, 0
    %v178 = vsel %vm137, %v35, 0
    %v181 = vsel %vm137, %v36, 0
    %v184 = vsel %vm137, %v37, 0
    %vm186 = vcmask 1043456
    %v188 = vsel %vm186, %v136, 0
    %190 = vmatprep.subr.mxu0 0.0
    %191 = vmatpush1.msra.mxu0 %v188
    %192 = vmatprep.subr.mxu0 0.0
    %193 = vmatpush1.msra.mxu0 0.0
    %194 = vmatprep.subr.mxu0 0.0
    %195 = vmatpush1.msra.mxu0 0.0
    %196 = vmatprep.subr.mxu0 0.0
    %197 = vmatpush1.msra.mxu0 0.0
    %198 = vmatprep.subr.mxu0 0.0
    %199 = vmatpush1.msra.mxu0 0.0
    %200 = vmatprep.subr.mxu0 0.0
    %201 = vmatpush1.msra.mxu0 0.0
    %202 = vmatprep.subr.mxu0 0.0
    %203 = vmatpush1.msra.mxu0 0.0
    %204 = vmatprep.subr.mxu0 0.0
    %205 = vmatpush1.msra.mxu0 0.0
    %206 = vmatprep.subr.mxu0 0.0
    %207 = vmatpush1.msra.mxu0 0.0
    %208 = vmatprep.subr.mxu0 0.0
    %209 = vmatpush1.msra.mxu0 0.0
    %210 = vmatprep.subr.mxu0 0.0
    %211 = vmatpush1.msra.mxu0 0.0
    %212 = vmatprep.subr.mxu0 0.0
    %213 = vmatpush1.msra.mxu0 0.0
    %214 = vmatprep.subr.mxu0 0.0
    %215 = vmatpush1.msra.mxu0 0.0
    %216 = vmatprep.subr.mxu0 0.0
    %217 = vmatpush1.msra.mxu0 0.0
    %218 = vmatprep.subr.mxu0 0.0
    %219 = vmatpush1.msra.mxu0 0.0
    %220 = vmatprep.subr.mxu0 0.0
    %221 = vmatpush1.msra.mxu0 0.0
    %222 = vmatprep.subr.mxu0 0.0
    %223 = vmatpush1.msra.mxu0 0.0
    %224 = vmatprep.subr.mxu0 0.0
    %225 = vmatpush1.msra.mxu0 0.0
    %226 = vmatprep.subr.mxu0 0.0
    %227 = vmatpush1.msra.mxu0 0.0
    %228 = vmatprep.subr.mxu0 0.0
    %229 = vmatpush1.msra.mxu0 0.0
    %230 = vmatprep.subr.mxu0 0.0
    %231 = vmatpush1.msra.mxu0 0.0
    %232 = vmatprep.subr.mxu0 0.0
    %233 = vmatpush1.msra.mxu0 0.0
    %234 = vmatprep.subr.mxu0 0.0
    %235 = vmatpush1.msra.mxu0 0.0
    %236 = vmatprep.subr.mxu0 0.0
    %237 = vmatpush1.msra.mxu0 0.0
    %238 = vmatprep.subr.mxu0 0.0
    %239 = vmatpush1.msra.mxu0 0.0
    %240 = vmatprep.subr.mxu0 0.0
    %241 = vmatpush1.msra.mxu0 0.0
    %242 = vmatprep.subr.mxu0 0.0
    %243 = vmatpush1.msra.mxu0 0.0
    %244 = vmatprep.subr.mxu0 0.0
    %245 = vmatpush1.msra.mxu0 0.0
    %246 = vmatprep.subr.mxu0 0.0
    %247 = vmatpush1.msra.mxu0 0.0
    %248 = vmatprep.subr.mxu0 0.0
    %249 = vmatpush1.msra.mxu0 0.0
    %250 = vmatprep.subr.mxu0 0.0
    %251 = vmatpush1.msra.mxu0 0.0
    %252 = vmatprep.subr.mxu0 0.0
    %253 = vmatpush1.msra.mxu0 0.0
    %254 = vmatprep.mubr.f32.mxu0 0.0
    %255 = vmatmul.mubr.f32.gmra.mrb[0].mxu0 %v139
    %v256 = vpop.f32.mrb[0].mxu0
    %v257 = vadd.f32 %v59, %v256
    %v258 = vpop.f32.mrb[0].mxu0
    %259 = vmatprep.mubr.f32.mxu0 0.0
    %260 = vmatmul.mubr.f32.gmra.mrb[0].mxu0 %v142
    %v261 = vpop.f32.mrb[0].mxu0
    %v262 = vadd.f32 %v64, %v261
    %v263 = vpop.f32.mrb[0].mxu0
    %264 = vmatprep.mubr.f32.mxu0 0.0
    %265 = vmatmul.mubr.f32.gmra.mrb[0].mxu0 %v145
    %v266 = vpop.f32.mrb[0].mxu0
    %v267 = vadd.f32 %v69, %v266
    %v268 = vpop.f32.mrb[0].mxu0
    %269 = vmatprep.mubr.f32.mxu0 0.0
    %270 = vmatmul.mubr.f32.gmra.mrb[0].mxu0 %v148
    %v271 = vpop.f32.mrb[0].mxu0
    %v272 = vadd.f32 %v74, %v271
    %v273 = vpop.f32.mrb[0].mxu0
    %274 = vmatprep.mubr.f32.mxu0 0.0
    %275 = vmatmul.mubr.f32.gmra.mrb[0].mxu0 %v151
    %v276 = vpop.f32.mrb[0].mxu0
    %v277 = vadd.f32 %v79, %v276
    %v278 = vpop.f32.mrb[0].mxu0
    %279 = vmatprep.mubr.f32.mxu0 0.0
    %280 = vmatmul.mubr.f32.gmra.mrb[0].mxu0 %v154
    %v281 = vpop.f32.mrb[0].mxu0
    %v282 = vadd.f32 %v84, %v281
    %v283 = vpop.f32.mrb[0].mxu0
    %284 = vmatprep.mubr.f32.mxu0 0.0
    %285 = vmatmul.mubr.f32.gmra.mrb[0].mxu0 %v157
    %v286 = vpop.f32.mrb[0].mxu0
    %v287 = vadd.f32 %v89, %v286
    %v288 = vpop.f32.mrb[0].mxu0
    %289 = vmatprep.mubr.f32.mxu0 0.0
    %290 = vmatmul.mubr.f32.gmra.mrb[0].mxu0 %v160
    %v291 = vpop.f32.mrb[0].mxu0
    %v292 = vadd.f32 %v94, %v291
    %v293 = vpop.f32.mrb[0].mxu0
    %294 = vmatprep.mubr.f32.mxu0 0.0
    %295 = vmatmul.mubr.f32.gmra.mrb[0].mxu0 %v163
    %v296 = vpop.f32.mrb[0].mxu0
    %v297 = vadd.f32 %v99, %v296
    %v298 = vpop.f32.mrb[0].mxu0
    %299 = vmatprep.mubr.f32.mxu0 0.0
    %300 = vmatmul.mubr.f32.gmra.mrb[0].mxu0 %v166
    %v301 = vpop.f32.mrb[0].mxu0
    %v302 = vadd.f32 %v104, %v301
    %v303 = vpop.f32.mrb[0].mxu0
    %304 = vmatprep.mubr.f32.mxu0 0.0
    %305 = vmatmul.mubr.f32.gmra.mrb[0].mxu0 %v169
    %v306 = vpop.f32.mrb[0].mxu0
    %v307 = vadd.f32 %v109, %v306
    %v308 = vpop.f32.mrb[0].mxu0
    %309 = vmatprep.mubr.f32.mxu0 0.0
    %310 = vmatmul.mubr.f32.gmra.mrb[0].mxu0 %v172
    %v311 = vpop.f32.mrb[0].mxu0
    %v312 = vadd.f32 %v114, %v311
    %v313 = vpop.f32.mrb[0].mxu0
    %314 = vmatprep.mubr.f32.mxu0 0.0
    %315 = vmatmul.mubr.f32.gmra.mrb[0].mxu0 %v175
    %v316 = vpop.f32.mrb[0].mxu0
    %v317 = vadd.f32 %v119, %v316
    %v318 = vpop.f32.mrb[0].mxu0
    %319 = vmatprep.mubr.f32.mxu0 0.0
    %320 = vmatmul.mubr.f32.gmra.mrb[0].mxu0 %v178
    %v321 = vpop.f32.mrb[0].mxu0
    %v322 = vadd.f32 %v124, %v321
    %v323 = vpop.f32.mrb[0].mxu0
    %324 = vmatprep.mubr.f32.mxu0 0.0
    %325 = vmatmul.mubr.f32.gmra.mrb[0].mxu0 %v181
    %v326 = vpop.f32.mrb[0].mxu0
    %v327 = vadd.f32 %v129, %v326
    %v328 = vpop.f32.mrb[0].mxu0
    %329 = vmatprep.mubr.f32.mxu0 0.0
    %330 = vmatmul.mubr.f32.gmra.mrb[0].mxu0 %v184
    %v331 = vpop.f32.mrb[0].mxu0
    %v332 = vadd.f32 %v134, %v331
    %v333 = vpop.f32.mrb[0].mxu0
    %334 = vdwg.mxu0
    %v335 = vmul.f32 %v257, 0.01
    %v336 = vmul.f32 %v262, 0.01
    %v337 = vmul.f32 %v267, 0.01
    %v338 = vmul.f32 %v272, 0.01
    %v339 = vmul.f32 %v277, 0.01
    %v340 = vmul.f32 %v282, 0.01
    %v341 = vmul.f32 %v287, 0.01
    %v342 = vmul.f32 %v292, 0.01
    %v343 = vmul.f32 %v297, 0.01
    %v344 = vmul.f32 %v302, 0.01
    %v345 = vmul.f32 %v307, 0.01
    %v346 = vmul.f32 %v312, 0.01
    %v347 = vmul.f32 %v317, 0.01
    %v348 = vmul.f32 %v322, 0.01
    %v349 = vmul.f32 %v327, 0.01
    %v350 = vmul.f32 %v332, 0.01
    %v351 = vmax.f32 %v257, %v335
    %v352 = vmax.f32 %v262, %v336
    %v353 = vmax.f32 %v267, %v337
    %v354 = vmax.f32 %v272, %v338
    %v355 = vmax.f32 %v277, %v339
    %v356 = vmax.f32 %v282, %v340
    %v357 = vmax.f32 %v287, %v341
    %v358 = vmax.f32 %v292, %v342
    %v359 = vmax.f32 %v297, %v343
    %v360 = vmax.f32 %v302, %v344
    %v361 = vmax.f32 %v307, %v345
    %v362 = vmax.f32 %v312, %v346
    %v363 = vmax.f32 %v317, %v347
    %v364 = vmax.f32 %v322, %v348
    %v365 = vmax.f32 %v327, %v349
    %v366 = vmax.f32 %v332, %v350
    %v367 = vstv %s39
    %368 = vmatprep.subr.mxu0 0.0
    %369 = vmatpush1.msra.mxu0 %v351
    %370 = vmatprep.subr.mxu0 0.0
    %371 = vmatpush1.msra.mxu0 %v352
    %372 = vmatprep.subr.mxu0 0.0
    %373 = vmatpush1.msra.mxu0 %v353
    %374 = vmatprep.subr.mxu0 0.0
    %375 = vmatpush1.msra.mxu0 %v354
    %376 = vmatprep.subr.mxu0 0.0
    %377 = vmatpush1.msra.mxu0 %v355
    %378 = vmatprep.subr.mxu0 0.0
    %379 = vmatpush1.msra.mxu0 %v356
    %380 = vmatprep.subr.mxu0 0.0
    %381 = vmatpush1.msra.mxu0 %v357
    %382 = vmatprep.subr.mxu0 0.0
    %383 = vmatpush1.msra.mxu0 %v358
    %384 = vmatprep.subr.mxu0 0.0
    %385 = vmatpush1.msra.mxu0 %v359
    %386 = vmatprep.subr.mxu0 0.0
    %387 = vmatpush1.msra.mxu0 %v360
    %388 = vmatprep.subr.mxu0 0.0
    %389 = vmatpush1.msra.mxu0 %v361
    %390 = vmatprep.subr.mxu0 0.0
    %391 = vmatpush1.msra.mxu0 %v362
    %392 = vmatprep.subr.mxu0 0.0
    %393 = vmatpush1.msra.mxu0 %v363
    %394 = vmatprep.subr.mxu0 0.0
    %395 = vmatpush1.msra.mxu0 %v364
    %396 = vmatprep.subr.mxu0 0.0
    %397 = vmatpush1.msra.mxu0 %v365
    %398 = vmatprep.subr.mxu0 0.0
    %399 = vmatpush1.msra.mxu0 %v366
    %400 = vmatprep.subr.mxu0 0.0
    %401 = vmatpush1.msra.mxu0 0.0
    %402 = vmatprep.subr.mxu0 0.0
    %403 = vmatpush1.msra.mxu0 0.0
    %404 = vmatprep.subr.mxu0 0.0
    %405 = vmatpush1.msra.mxu0 0.0
    %406 = vmatprep.subr.mxu0 0.0
    %407 = vmatpush1.msra.mxu0 0.0
    %408 = vmatprep.subr.mxu0 0.0
    %409 = vmatpush1.msra.mxu0 0.0
    %410 = vmatprep.subr.mxu0 0.0
    %411 = vmatpush1.msra.mxu0 0.0
    %412 = vmatprep.subr.mxu0 0.0
    %413 = vmatpush1.msra.mxu0 0.0
    %414 = vmatprep.subr.mxu0 0.0
    %415 = vmatpush1.msra.mxu0 0.0
    %416 = vmatprep.subr.mxu0 0.0
    %417 = vmatpush1.msra.mxu0 0.0
    %418 = vmatprep.subr.mxu0 0.0
    %419 = vmatpush1.msra.mxu0 0.0
    %420 = vmatprep.subr.mxu0 0.0
    %421 = vmatpush1.msra.mxu0 0.0
    %422 = vmatprep.subr.mxu0 0.0
    %423 = vmatpush1.msra.mxu0 0.0
    %424 = vmatprep.subr.mxu0 0.0
    %425 = vmatpush1.msra.mxu0 0.0
    %426 = vmatprep.subr.mxu0 0.0
    %427 = vmatpush1.msra.mxu0 0.0
    %428 = vmatprep.subr.mxu0 0.0
    %429 = vmatpush1.msra.mxu0 0.0
    %430 = vmatprep.subr.mxu0 0.0
    %431 = vmatpush1.msra.mxu0 0.0
    %432 = vmatprep.mubr.f32.mxu0 0.0
    %433 = vmatmul.mubr.f32.gmra.mrb[0].mxu0 %v38
    %v434 = vpop.f32.mrb[0].mxu0
    %v435 = vadd.f32 %v367, %v434
    %v436 = vpop.f32.mrb[0].mxu0
    %437 = vdwg.mxu0
    %438 = vst [vmem:[#allocation3] sm:$0x1] %v435
    // Predicated region
    $region22: #{tpu_custom_call.1} parent=1 // pred_check
      _
    $region23: #{tpu_custom_call.1} parent=1 // pred_check_branch
      %440 = sbr.rel (0) target = $region25
    $region24: #{tpu_custom_call.1} parent=1 // pred_region
      %s442 = ssub.s32 16, 16
      %443 = vsyncadd [#allocation4], %s442
      %s445 = sshll.u32 [#allocation3], 4
      %s446 = int_to_ptr.vmem [resolvable:$true] %s445
      %448 = dma.vmem_to_hbm [thread:$0]  %s446, 16, %s5, [#allocation4]
    $region25: #{tpu_custom_call.1} parent=1 // pred_fallthru
      _
    // Predicated region
    $region26: #{tpu_custom_call.1} parent=1 // pred_check
      _
    $region27: #{tpu_custom_call.1} parent=1 // pred_check_branch
      %450 = sbr.rel (0) target = $region29
    $region28: #{tpu_custom_call.1} parent=1 // pred_region
      %451 = dma.done [#allocation4], 16
    $region29: #{tpu_custom_call.1} parent=1 // pred_fallthru
      _
    %452 = vsyncpa [#allocation4], 1

</llo_original>
